<compile_context>
chip_gen: v5e
topology: v5e:2x2
jax: 0.10.0
libtpu: 0.0.40
codegen_flags: <defaults>
</compile_context>

<pallas_src>
import functools

import jax
import jax.numpy as jnp
from jax.experimental import pallas as pl
from jax.experimental.pallas import tpu as pltpu


LEAKY_SLOPE = 0.01   # torch.nn.LeakyReLU default negative_slope
LANE = 128           # vreg lane width
SUBLANE = 8          # vreg sublane count (f32)

# Flipped to False if this JAX build rejects pipeline_mode=pl.Buffered(1).
_single_buffer_ok = [True]


def _round_up(n: int, m: int) -> int:
    return ((n + m - 1) // m) * m


def _vmem_cap_bytes() -> int:
    """Per-core VMEM capacity (falls back to 128 MiB = v5e/v6e)."""
    try:
        return int(pltpu.get_tpu_info().vmem_capacity_bytes)
    except Exception:
        return 128 << 20


def _resident_spec(shape, single_buffer: bool) -> pl.BlockSpec:
    """BlockSpec for a grid-invariant (weight/bias) operand pinned at block (0,0)."""
    if single_buffer:
        return pl.BlockSpec(shape, lambda i: (0, 0), pipeline_mode=pl.Buffered(1))
    return pl.BlockSpec(shape, lambda i: (0, 0))


def _make_mlp_kernel(n_layers: int):
    """Fused MLP kernel for `n_layers` Linear layers.

    Ref order: (x, w0, b0, ..., w{n-1}, b{n-1}, out)
      x  : (TB, in_pad)       bf16
      wi : (in_pad, out_pad)  bf16  (pre-transposed: h @ W)
      bi : (1, out_pad)       f32
      out: (TB, out_pad)      output dtype
    LeakyReLU after every layer except the last (matches DynamicNet).
    """

    def kernel(*refs):
        x_ref = refs[0]
        out_ref = refs[-1]
        param_refs = refs[1:-1]

        h = x_ref[...]                                        # bf16
        for i in range(n_layers):
            w = param_refs[2 * i][...]                        # bf16 (in_pad, out_pad)
            b = param_refs[2 * i + 1][...]                    # f32  (1, out_pad)
            acc = jnp.dot(h, w, preferred_element_type=jnp.float32) + b
            if i < n_layers - 1:
                acc = jnp.maximum(acc, LEAKY_SLOPE * acc)     # LeakyReLU (2 VALU ops)
                h = acc.astype(jnp.bfloat16)                  # keep MXU inputs bf16
            else:
                out_ref[...] = acc.astype(out_ref.dtype)

    return kernel


# ----------------------------------------------------------------------------
# One-time parameter packing (transpose + bf16 cast + 128-lane zero padding).
# ----------------------------------------------------------------------------
def init_dynamic_net_params(key, inputshape, array, outputshape):
    """Deterministic init mimicking torch.nn.Linear default U(-1/sqrt(fan_in), ..)."""
    sizes = [inputshape] + list(array) + [outputshape]
    params = []
    for i in range(len(sizes) - 1):
        fan_in, fan_out = sizes[i], sizes[i + 1]
        key, kw, kb = jax.random.split(key, 3)
        bound = 1.0 / jnp.sqrt(jnp.float32(fan_in))
        # PyTorch stores weight as (out, in); prepare_params transposes once.
        w = jax.random.uniform(kw, (fan_out, fan_in), jnp.float32, -bound, bound)
        b = jax.random.uniform(kb, (fan_out,), jnp.float32, -bound, bound)
        params.append((w, b))
    return params


def prepare_params(params):
    """Pack PyTorch-convention (W (out,in), b (out,)) pairs for the kernel.

    Done ONCE at init: transpose -> bf16 -> zero-pad features to 128 multiples.
    Zero padding is mathematically exact (zero rows/cols stay zero through
    LeakyReLU); biases stay f32.
    """
    prepped = []
    for (w, b) in params:
        out_f, in_f = w.shape
        in_p, out_p = _round_up(in_f, LANE), _round_up(out_f, LANE)
        wt = jnp.pad(jnp.transpose(w).astype(jnp.bfloat16),          # (in, out)
                     ((0, in_p - in_f), (0, out_p - out_f)))
        bp = jnp.pad(b.astype(jnp.float32), (0, out_p - out_f)).reshape(1, -1)
        prepped.append((wt, bp))
    return prepped


# ----------------------------------------------------------------------------
# Cached, jitted forward builders keyed on the static configuration.
# ----------------------------------------------------------------------------
@functools.lru_cache(maxsize=None)
def _build_forward(batch, in_f, out_features, in_pad, padded_outs, out_dtype,
                   single_buffer):
    n_layers = len(padded_outs)
    padded = (in_pad,) + tuple(padded_outs)
    out_pad = padded[-1]
    out_itemsize = jnp.zeros((), out_dtype).dtype.itemsize

    # Batch tiling: up to 512 rows, multiple of 8 sublanes.
    tb = min(512, _round_up(batch, SUBLANE))
    padded_batch = _round_up(batch, tb)
    grid = (padded_batch // tb,)

    # --- BlockSpecs ----------------------------------------------------------
    in_specs = [pl.BlockSpec((tb, in_pad), lambda i: (i, 0))]
    for li in range(n_layers):
        i_p, o_p = padded[li], padded[li + 1]
        in_specs.append(_resident_spec((i_p, o_p), single_buffer))   # weight
        in_specs.append(_resident_spec((1, o_p), single_buffer))     # bias
    out_specs = pl.BlockSpec((tb, out_pad), lambda i: (i, 0))

    # --- VMEM budget (no double counting) --------------------------------------
    weight_bytes = sum(padded[i] * padded[i + 1] * 2 + padded[i + 1] * 4
                       for i in range(n_layers))
    resident_bytes = weight_bytes * (1 if single_buffer else 2)
    io_bytes = 2 * tb * in_pad * 2 + 2 * tb * out_pad * out_itemsize   # dbl-buffered
    act_bytes = 4 * tb * max(padded) * 4                               # f32 temporaries
    vmem_needed = resident_bytes + io_bytes + act_bytes + (2 << 20)    # + scratch slack
    vmem_cap = int(0.75 * _vmem_cap_bytes())    # ≈48 MiB v7x, ≈96 MiB v5e/v6e
    vmem_limit = int(min(max(vmem_needed, 32 << 20), vmem_cap))

    flops = 2 * padded_batch * sum(padded[i] * padded[i + 1] for i in range(n_layers))
    bytes_accessed = (padded_batch * in_pad * 2 + weight_bytes
                      + padded_batch * out_pad * out_itemsize)
    cost = pl.CostEstimate(flops=flops, transcendentals=0,
                           bytes_accessed=bytes_accessed)

    call = pl.pallas_call(
        _make_mlp_kernel(n_layers),
        out_shape=jax.ShapeDtypeStruct((padded_batch, out_pad), out_dtype),
        grid=grid,
        in_specs=in_specs,
        out_specs=out_specs,
        compiler_params=pltpu.CompilerParams(
            dimension_semantics=("parallel",),
            vmem_limit_bytes=vmem_limit,
        ),
        cost_estimate=cost,
    )

    def fwd(x, *flat_params):
        # Zero-pad batch rows / input features (exact; padded rows sliced off).
        x_p = jnp.pad(x.astype(jnp.bfloat16),
                      ((0, padded_batch - batch), (0, in_pad - in_f)))
        out_p = call(x_p, *flat_params)
        return out_p[:batch, :out_features]

    return jax.jit(fwd)


def dynamic_net_forward(x, prepped_params, outputshape):
    """Fused MLP forward.

    x: (batch, inputshape) float32
    prepped_params: output of prepare_params() (packed once at init).
    """
    batch, in_f = x.shape
    in_pad = int(prepped_params[0][0].shape[0])
    padded_outs = tuple(int(w.shape[1]) for (w, _) in prepped_params)

    flat = [x]
    for w, b in prepped_params:
        flat.append(w)
        flat.append(b)

    attempts = (True, False) if _single_buffer_ok[0] else (False,)
    last_err = None
    for sb in attempts:
        try:
            fwd = _build_forward(batch, in_f, int(outputshape), in_pad, padded_outs,
                                 x.dtype, sb)
            return fwd(*flat)
        except Exception as e:                     # e.g. Buffered(1) unsupported
            last_err = e
            if not sb:
                raise
            _single_buffer_ok[0] = False
    raise last_err


def _reference_forward(x, params):
    """Pure-JAX f32 reference matching PyTorch semantics."""
    h = x
    n = len(params)
    for i, (w, b) in enumerate(params):
        h = h @ w.T + b
        if i < n - 1:
            h = jnp.where(h >= 0, h, LEAKY_SLOPE * h)
    return h


if __name__ == "__main__":
    # Small shapes consistent with the module:
    # DynamicNet(inputshape=32, array=[64, 48], outputshape=16), batch=8.
    inputshape, array, outputshape = 32, [64, 48], 16
    batch = 8

    key = jax.random.PRNGKey(0)
    key, kx = jax.random.split(key)
    x = jax.random.normal(kx, (batch, inputshape), jnp.float32)
    params = init_dynamic_net_params(key, inputshape, array, outputshape)

    # One-time packing (transpose / bf16 / pad) -- hoisted out of the forward.
    prepped = prepare_params(params)
    prepped = jax.block_until_ready(prepped)

    out = dynamic_net_forward(x, prepped, outputshape)
    out = jax.block_until_ready(out)

    ref = _reference_forward(x, params)
    assert out.shape == (batch, outputshape)
    # bf16 matmul inputs with f32 accumulation -> loosened tolerance vs f32 ref.
    assert jnp.allclose(out, ref, atol=2e-2, rtol=2e-2), "mismatch vs reference"

    print("KERNEL_OK")
</pallas_src>

<mosaic_0001>
module attributes {stable_mosaic.version = 11 : i64} {
  func.func @kernel(%arg0: i32, %arg1: memref<8x128xbf16, #tpu.memory_space<vmem>>, %arg2: memref<128x128xbf16, #tpu.memory_space<vmem>>, %arg3: memref<1x128xf32, #tpu.memory_space<vmem>>, %arg4: memref<128x128xbf16, #tpu.memory_space<vmem>>, %arg5: memref<1x128xf32, #tpu.memory_space<vmem>>, %arg6: memref<128x128xbf16, #tpu.memory_space<vmem>>, %arg7: memref<1x128xf32, #tpu.memory_space<vmem>>, %arg8: memref<8x128xf32, #tpu.memory_space<vmem>>) attributes {dimension_semantics = [#tpu.dimension_semantics<parallel>], iteration_bounds = array<i64: 1>, scalar_prefetch = 0 : i64, scratch_operands = 0 : i64, tpu.core_type = #tpu.core_type<tc>, window_params = [{transform_indices = @transform_0, window_bounds = array<i64: 8, 128>}, {pipeline_mode = #tpu.pipeline_mode<synchronous>, transform_indices = @transform_1, window_bounds = array<i64: 128, 128>}, {pipeline_mode = #tpu.pipeline_mode<synchronous>, transform_indices = @transform_2, window_bounds = array<i64: 1, 128>}, {pipeline_mode = #tpu.pipeline_mode<synchronous>, transform_indices = @transform_3, window_bounds = array<i64: 128, 128>}, {pipeline_mode = #tpu.pipeline_mode<synchronous>, transform_indices = @transform_4, window_bounds = array<i64: 1, 128>}, {pipeline_mode = #tpu.pipeline_mode<synchronous>, transform_indices = @transform_5, window_bounds = array<i64: 128, 128>}, {pipeline_mode = #tpu.pipeline_mode<synchronous>, transform_indices = @transform_6, window_bounds = array<i64: 1, 128>}, {transform_indices = @transform_7, window_bounds = array<i64: 8, 128>}]} {
    %c0 = arith.constant 0 : index
    %c0_0 = arith.constant 0 : index
    %0 = vector.load %arg1[%c0, %c0_0] : memref<8x128xbf16, #tpu.memory_space<vmem>>, vector<8x128xbf16>
    %c0_1 = arith.constant 0 : index
    %c0_2 = arith.constant 0 : index
    %1 = vector.load %arg2[%c0_1, %c0_2] : memref<128x128xbf16, #tpu.memory_space<vmem>>, vector<128x128xbf16>
    %c0_3 = arith.constant 0 : index
    %c0_4 = arith.constant 0 : index
    %2 = vector.load %arg3[%c0_3, %c0_4] : memref<1x128xf32, #tpu.memory_space<vmem>>, vector<1x128xf32>
    %cst = arith.constant dense<0.000000e+00> : vector<8x128xf32>
    %3 = tpu.matmul %0, %1, %cst {dimension_numbers = #tpu.dot_dimension_numbers<[1], [0], [0], [1], [0, 0, 1, 1], [], []>} : vector<8x128xbf16>, vector<128x128xbf16>, vector<8x128xf32> -> vector<8x128xf32>
    %4 = vector.broadcast %2 : vector<1x128xf32> to vector<8x128xf32>
    %5 = arith.addf %3, %4 : vector<8x128xf32>
    %cst_5 = arith.constant 0.00999999977 : f32
    %6 = vector.broadcast %cst_5 : f32 to vector<8x128xf32>
    %7 = arith.mulf %6, %5 : vector<8x128xf32>
    %8 = arith.maximumf %5, %7 : vector<8x128xf32>
    %9 = arith.truncf %8 : vector<8x128xf32> to vector<8x128xbf16>
    %c0_6 = arith.constant 0 : index
    %c0_7 = arith.constant 0 : index
    %10 = vector.load %arg4[%c0_6, %c0_7] : memref<128x128xbf16, #tpu.memory_space<vmem>>, vector<128x128xbf16>
    %c0_8 = arith.constant 0 : index
    %c0_9 = arith.constant 0 : index
    %11 = vector.load %arg5[%c0_8, %c0_9] : memref<1x128xf32, #tpu.memory_space<vmem>>, vector<1x128xf32>
    %cst_10 = arith.constant dense<0.000000e+00> : vector<8x128xf32>
    %12 = tpu.matmul %9, %10, %cst_10 {dimension_numbers = #tpu.dot_dimension_numbers<[1], [0], [0], [1], [0, 0, 1, 1], [], []>} : vector<8x128xbf16>, vector<128x128xbf16>, vector<8x128xf32> -> vector<8x128xf32>
    %13 = vector.broadcast %11 : vector<1x128xf32> to vector<8x128xf32>
    %14 = arith.addf %12, %13 : vector<8x128xf32>
    %cst_11 = arith.constant 0.00999999977 : f32
    %15 = vector.broadcast %cst_11 : f32 to vector<8x128xf32>
    %16 = arith.mulf %15, %14 : vector<8x128xf32>
    %17 = arith.maximumf %14, %16 : vector<8x128xf32>
    %18 = arith.truncf %17 : vector<8x128xf32> to vector<8x128xbf16>
    %c0_12 = arith.constant 0 : index
    %c0_13 = arith.constant 0 : index
    %19 = vector.load %arg6[%c0_12, %c0_13] : memref<128x128xbf16, #tpu.memory_space<vmem>>, vector<128x128xbf16>
    %c0_14 = arith.constant 0 : index
    %c0_15 = arith.constant 0 : index
    %20 = vector.load %arg7[%c0_14, %c0_15] : memref<1x128xf32, #tpu.memory_space<vmem>>, vector<1x128xf32>
    %cst_16 = arith.constant dense<0.000000e+00> : vector<8x128xf32>
    %21 = tpu.matmul %18, %19, %cst_16 {dimension_numbers = #tpu.dot_dimension_numbers<[1], [0], [0], [1], [0, 0, 1, 1], [], []>} : vector<8x128xbf16>, vector<128x128xbf16>, vector<8x128xf32> -> vector<8x128xf32>
    %22 = vector.broadcast %20 : vector<1x128xf32> to vector<8x128xf32>
    %23 = arith.addf %21, %22 : vector<8x128xf32>
    %c0_17 = arith.constant 0 : index
    %c0_18 = arith.constant 0 : index
    %24 = vector.load %arg8[%c0_17, %c0_18] : memref<8x128xf32, #tpu.memory_space<vmem>>, vector<8x128xf32>
    tpu.vector_store %arg8[%c0_17, %c0_18], %23 {strides = array<i32>} : memref<8x128xf32, #tpu.memory_space<vmem>>, vector<8x128xf32>,
    return
  }
  func.func @transform_0(%arg0: i32) -> (i32, i32) {
    %c0_i32 = arith.constant 0 : i32
    %c0_i32_0 = arith.constant 0 : i32
    return %arg0, %c0_i32 : i32, i32
  }
  func.func @transform_1(%arg0: i32) -> (i32, i32) {
    %c0_i32 = arith.constant 0 : i32
    %c0_i32_0 = arith.constant 0 : i32
    %c0_i32_1 = arith.constant 0 : i32
    return %c0_i32, %c0_i32_0 : i32, i32
  }
  func.func @transform_2(%arg0: i32) -> (i32, i32) {
    %c0_i32 = arith.constant 0 : i32
    %c0_i32_0 = arith.constant 0 : i32
    %c0_i32_1 = arith.constant 0 : i32
    return %c0_i32, %c0_i32_0 : i32, i32
  }
  func.func @transform_3(%arg0: i32) -> (i32, i32) {
    %c0_i32 = arith.constant 0 : i32
    %c0_i32_0 = arith.constant 0 : i32
    %c0_i32_1 = arith.constant 0 : i32
    return %c0_i32, %c0_i32_0 : i32, i32
  }
  func.func @transform_4(%arg0: i32) -> (i32, i32) {
    %c0_i32 = arith.constant 0 : i32
    %c0_i32_0 = arith.constant 0 : i32
    %c0_i32_1 = arith.constant 0 : i32
    return %c0_i32, %c0_i32_0 : i32, i32
  }
  func.func @transform_5(%arg0: i32) -> (i32, i32) {
    %c0_i32 = arith.constant 0 : i32
    %c0_i32_0 = arith.constant 0 : i32
    %c0_i32_1 = arith.constant 0 : i32
    return %c0_i32, %c0_i32_0 : i32, i32
  }
  func.func @transform_6(%arg0: i32) -> (i32, i32) {
    %c0_i32 = arith.constant 0 : i32
    %c0_i32_0 = arith.constant 0 : i32
    %c0_i32_1 = arith.constant 0 : i32
    return %c0_i32, %c0_i32_0 : i32, i32
  }
  func.func @transform_7(%arg0: i32) -> (i32, i32) {
    %c0_i32 = arith.constant 0 : i32
    %c0_i32_0 = arith.constant 0 : i32
    return %arg0, %c0_i32 : i32, i32
  }
}

module attributes {stable_mosaic.version = 11 : i64} {
  func.func @kernel(%arg0: i32, %arg1: memref<8x128xbf16, #tpu.memory_space<vmem>>, %arg2: memref<128x128xbf16, #tpu.memory_space<vmem>>, %arg3: memref<1x128xf32, #tpu.memory_space<vmem>>, %arg4: memref<128x128xbf16, #tpu.memory_space<vmem>>, %arg5: memref<1x128xf32, #tpu.memory_space<vmem>>, %arg6: memref<128x128xbf16, #tpu.memory_space<vmem>>, %arg7: memref<1x128xf32, #tpu.memory_space<vmem>>, %arg8: memref<8x128xf32, #tpu.memory_space<vmem>>) attributes {dimension_semantics = [#tpu.dimension_semantics<parallel>], iteration_bounds = array<i64: 1>, scalar_prefetch = 0 : i64, scratch_operands = 0 : i64, tpu.core_type = #tpu.core_type<tc>, window_params = [{transform_indices = @transform_0, window_bounds = array<i64: 8, 128>}, {pipeline_mode = #tpu.pipeline_mode<synchronous>, transform_indices = @transform_1, window_bounds = array<i64: 128, 128>}, {pipeline_mode = #tpu.pipeline_mode<synchronous>, transform_indices = @transform_2, window_bounds = array<i64: 1, 128>}, {pipeline_mode = #tpu.pipeline_mode<synchronous>, transform_indices = @transform_3, window_bounds = array<i64: 128, 128>}, {pipeline_mode = #tpu.pipeline_mode<synchronous>, transform_indices = @transform_4, window_bounds = array<i64: 1, 128>}, {pipeline_mode = #tpu.pipeline_mode<synchronous>, transform_indices = @transform_5, window_bounds = array<i64: 128, 128>}, {pipeline_mode = #tpu.pipeline_mode<synchronous>, transform_indices = @transform_6, window_bounds = array<i64: 1, 128>}, {transform_indices = @transform_7, window_bounds = array<i64: 8, 128>}]} {
    %c0 = arith.constant 0 : index
    %c0_0 = arith.constant 0 : index
    %0 = vector.load %arg1[%c0, %c0_0] : memref<8x128xbf16, #tpu.memory_space<vmem>>, vector<8x128xbf16>
    %c0_1 = arith.constant 0 : index
    %c0_2 = arith.constant 0 : index
    %1 = vector.load %arg2[%c0_1, %c0_2] : memref<128x128xbf16, #tpu.memory_space<vmem>>, vector<128x128xbf16>
    %c0_3 = arith.constant 0 : index
    %c0_4 = arith.constant 0 : index
    %2 = vector.load %arg3[%c0_3, %c0_4] : memref<1x128xf32, #tpu.memory_space<vmem>>, vector<1x128xf32>
    %cst = arith.constant dense<0.000000e+00> : vector<8x128xf32>
    %3 = tpu.matmul %0, %1, %cst {dimension_numbers = #tpu.dot_dimension_numbers<[1], [0], [0], [1], [0, 0, 1, 1], [], []>} : vector<8x128xbf16>, vector<128x128xbf16>, vector<8x128xf32> -> vector<8x128xf32>
    %4 = vector.broadcast %2 : vector<1x128xf32> to vector<8x128xf32>
    %5 = arith.addf %3, %4 : vector<8x128xf32>
    %cst_5 = arith.constant 0.00999999977 : f32
    %6 = vector.broadcast %cst_5 : f32 to vector<8x128xf32>
    %7 = arith.mulf %6, %5 : vector<8x128xf32>
    %8 = arith.maximumf %5, %7 : vector<8x128xf32>
    %9 = arith.truncf %8 : vector<8x128xf32> to vector<8x128xbf16>
    %c0_6 = arith.constant 0 : index
    %c0_7 = arith.constant 0 : index
    %10 = vector.load %arg4[%c0_6, %c0_7] : memref<128x128xbf16, #tpu.memory_space<vmem>>, vector<128x128xbf16>
    %c0_8 = arith.constant 0 : index
    %c0_9 = arith.constant 0 : index
    %11 = vector.load %arg5[%c0_8, %c0_9] : memref<1x128xf32, #tpu.memory_space<vmem>>, vector<1x128xf32>
    %cst_10 = arith.constant dense<0.000000e+00> : vector<8x128xf32>
    %12 = tpu.matmul %9, %10, %cst_10 {dimension_numbers = #tpu.dot_dimension_numbers<[1], [0], [0], [1], [0, 0, 1, 1], [], []>} : vector<8x128xbf16>, vector<128x128xbf16>, vector<8x128xf32> -> vector<8x128xf32>
    %13 = vector.broadcast %11 : vector<1x128xf32> to vector<8x128xf32>
    %14 = arith.addf %12, %13 : vector<8x128xf32>
    %cst_11 = arith.constant 0.00999999977 : f32
    %15 = vector.broadcast %cst_11 : f32 to vector<8x128xf32>
    %16 = arith.mulf %15, %14 : vector<8x128xf32>
    %17 = arith.maximumf %14, %16 : vector<8x128xf32>
    %18 = arith.truncf %17 : vector<8x128xf32> to vector<8x128xbf16>
    %c0_12 = arith.constant 0 : index
    %c0_13 = arith.constant 0 : index
    %19 = vector.load %arg6[%c0_12, %c0_13] : memref<128x128xbf16, #tpu.memory_space<vmem>>, vector<128x128xbf16>
    %c0_14 = arith.constant 0 : index
    %c0_15 = arith.constant 0 : index
    %20 = vector.load %arg7[%c0_14, %c0_15] : memref<1x128xf32, #tpu.memory_space<vmem>>, vector<1x128xf32>
    %cst_16 = arith.constant dense<0.000000e+00> : vector<8x128xf32>
    %21 = tpu.matmul %18, %19, %cst_16 {dimension_numbers = #tpu.dot_dimension_numbers<[1], [0], [0], [1], [0, 0, 1, 1], [], []>} : vector<8x128xbf16>, vector<128x128xbf16>, vector<8x128xf32> -> vector<8x128xf32>
    %22 = vector.broadcast %20 : vector<1x128xf32> to vector<8x128xf32>
    %23 = arith.addf %21, %22 : vector<8x128xf32>
    %c0_17 = arith.constant 0 : index
    %c0_18 = arith.constant 0 : index
    %24 = vector.load %arg8[%c0_17, %c0_18] : memref<8x128xf32, #tpu.memory_space<vmem>>, vector<8x128xf32>
    tpu.vector_store %arg8[%c0_17, %c0_18], %23 {strides = array<i32>} : memref<8x128xf32, #tpu.memory_space<vmem>>, vector<8x128xf32>,
    return
  }
  func.func @transform_0(%arg0: i32) -> (i32, i32) {
    %c0_i32 = arith.constant 0 : i32
    %c0_i32_0 = arith.constant 0 : i32
    return %arg0, %c0_i32 : i32, i32
  }
  func.func @transform_1(%arg0: i32) -> (i32, i32) {
    %c0_i32 = arith.constant 0 : i32
    %c0_i32_0 = arith.constant 0 : i32
    %c0_i32_1 = arith.constant 0 : i32
    return %c0_i32, %c0_i32_0 : i32, i32
  }
  func.func @transform_2(%arg0: i32) -> (i32, i32) {
    %c0_i32 = arith.constant 0 : i32
    %c0_i32_0 = arith.constant 0 : i32
    %c0_i32_1 = arith.constant 0 : i32
    return %c0_i32, %c0_i32_0 : i32, i32
  }
  func.func @transform_3(%arg0: i32) -> (i32, i32) {
    %c0_i32 = arith.constant 0 : i32
    %c0_i32_0 = arith.constant 0 : i32
    %c0_i32_1 = arith.constant 0 : i32
    return %c0_i32, %c0_i32_0 : i32, i32
  }
  func.func @transform_4(%arg0: i32) -> (i32, i32) {
    %c0_i32 = arith.constant 0 : i32
    %c0_i32_0 = arith.constant 0 : i32
    %c0_i32_1 = arith.constant 0 : i32
    return %c0_i32, %c0_i32_0 : i32, i32
  }
  func.func @transform_5(%arg0: i32) -> (i32, i32) {
    %c0_i32 = arith.constant 0 : i32
    %c0_i32_0 = arith.constant 0 : i32
    %c0_i32_1 = arith.constant 0 : i32
    return %c0_i32, %c0_i32_0 : i32, i32
  }
  func.func @transform_6(%arg0: i32) -> (i32, i32) {
    %c0_i32 = arith.constant 0 : i32
    %c0_i32_0 = arith.constant 0 : i32
    %c0_i32_1 = arith.constant 0 : i32
    return %c0_i32, %c0_i32_0 : i32, i32
  }
  func.func @transform_7(%arg0: i32) -> (i32, i32) {
    %c0_i32 = arith.constant 0 : i32
    %c0_i32_0 = arith.constant 0 : i32
    return %arg0, %c0_i32 : i32, i32
  }
}

</mosaic_0001>

<llo_original>
// kernel: fwd.1
$region0: #{fwd.1}
  #allocation0 [shape = 'u32[]', space=smem, size = 0x4, offset = 0x4, fixed_abs, tag = 'smem constant byte address 0x4 - core index']
  #allocation1 [shape = 'u32[72,128]{1,0:T(1,128)}', space=vmem, size = 0x9000, scoped, tag = 'internal scratch']
  %s0 = inlined_call_operand.vmem [shape: bf16[8,128], index: 0, kind: input, shape index: {}]
  %s1 = inlined_call_operand.hbm [shape: bf16[128,128], index: 1, kind: input, shape index: {}]
  %s2 = inlined_call_operand.vmem [shape: f32[1,128], index: 2, kind: input, shape index: {}]
  %s3 = inlined_call_operand.hbm [shape: bf16[128,128], index: 3, kind: input, shape index: {}]
  %s4 = inlined_call_operand.vmem [shape: f32[1,128], index: 4, kind: input, shape index: {}]
  %s5 = inlined_call_operand.hbm [shape: bf16[128,128], index: 5, kind: input, shape index: {}]
  %s6 = inlined_call_operand.vmem [shape: f32[1,128], index: 6, kind: input, shape index: {}]
  %s7 = inlined_call_operand.hbm [shape: f32[8,128], index: 7, kind: output, shape index: {}]
  %s8 = sld [smem:[#allocation0]]
  $region50: #{fwd.1} parent=0
    _
  %s10 = ssub.s32 1, %s8
  %s11 = scalar_select 0, %s10, %s8
  $region1: #{fwd.1} parent=0
    #allocation2 [shape = 'u8[32768]{0}', space=vmem, size = 0x8000, scoped, tag = 'input window, operand 1, single buffered']
    #allocation3 [shape = 's32[1]{0}', space=sflag, size = 0x4, scoped, tag = 'scoped memory for fwd.1']
    #allocation4 [shape = 's32[1]{0}', space=sflag, size = 0x4, scoped, tag = 'scoped memory for fwd.1']
    #allocation5 [shape = 'u8[32768]{0}', space=vmem, size = 0x8000, scoped, tag = 'input window, operand 3, single buffered']
    #allocation6 [shape = 's32[1]{0}', space=sflag, size = 0x4, scoped, tag = 'scoped memory for fwd.1']
    #allocation7 [shape = 'u8[32768]{0}', space=vmem, size = 0x8000, scoped, tag = 'input window, operand 5, single buffered']
    #allocation8 [shape = 'u8[4096]{0}', space=vmem, size = 0x1000, scoped, tag = 'output window, operand 0, single buffered']
    %12 = vsyncpa [#allocation3], 0
    %13 = vsyncpa [#allocation6], 0
    %14 = vsyncpa [#allocation4], 0
    // Predicated region
    $region2: #{fwd.1} parent=1 // pred_check
      _
    $region3: #{fwd.1} parent=1 // pred_check_branch
      %16 = sbr.rel (0) target = $region5
    $region4: #{fwd.1} parent=1 // pred_region
      _
    $region5: #{fwd.1} parent=1 // pred_fallthru
      _
    // Predicated region
    $region6: #{fwd.1} parent=1 // pred_check
      _
    $region7: #{fwd.1} parent=1 // pred_check_branch
      %18 = sbr.rel (0) target = $region9
    $region8: #{fwd.1} parent=1 // pred_region
      %20 = vsyncadd [#allocation3], 0
      %s21 = sshll.u32 %s1, 4
      %s22 = int_to_ptr.hbm [resolvable:$true] %s21
      %s23 = sshll.u32 [#allocation2], 4
      %s24 = int_to_ptr.vmem [resolvable:$true] %s23
      %29 = dma.hbm_to_vmem [thread:$0]  %s22, 1024, %s24, [#allocation3], 64, 64, 4
    $region9: #{fwd.1} parent=1 // pred_fallthru
      _
    // Predicated region
    $region10: #{fwd.1} parent=1 // pred_check
      _
    $region11: #{fwd.1} parent=1 // pred_check_branch
      %31 = sbr.rel (0) target = $region13
    $region12: #{fwd.1} parent=1 // pred_region
      _
    $region13: #{fwd.1} parent=1 // pred_fallthru
      _
    // Predicated region
    $region14: #{fwd.1} parent=1 // pred_check
      _
    $region15: #{fwd.1} parent=1 // pred_check_branch
      %33 = sbr.rel (0) target = $region17
    $region16: #{fwd.1} parent=1 // pred_region
      %35 = vsyncadd [#allocation6], 0
      %s36 = sshll.u32 %s3, 4
      %s37 = int_to_ptr.hbm [resolvable:$true] %s36
      %s38 = sshll.u32 [#allocation5], 4
      %s39 = int_to_ptr.vmem [resolvable:$true] %s38
      %44 = dma.hbm_to_vmem [thread:$0]  %s37, 1024, %s39, [#allocation6], 64, 64, 4
    $region17: #{fwd.1} parent=1 // pred_fallthru
      _
    // Predicated region
    $region18: #{fwd.1} parent=1 // pred_check
      _
    $region19: #{fwd.1} parent=1 // pred_check_branch
      %46 = sbr.rel (0) target = $region21
    $region20: #{fwd.1} parent=1 // pred_region
      _
    $region21: #{fwd.1} parent=1 // pred_fallthru
      _
    // Predicated region
    $region22: #{fwd.1} parent=1 // pred_check
      _
    $region23: #{fwd.1} parent=1 // pred_check_branch
      %48 = sbr.rel (0) target = $region25
    $region24: #{fwd.1} parent=1 // pred_region
      %50 = vsyncadd [#allocation6], 0
      %s51 = sshll.u32 %s5, 4
      %s52 = int_to_ptr.hbm [resolvable:$true] %s51
      %s53 = sshll.u32 [#allocation7], 4
      %s54 = int_to_ptr.vmem [resolvable:$true] %s53
      %59 = dma.hbm_to_vmem [thread:$0]  %s52, 1024, %s54, [#allocation6], 64, 64, 4
    $region25: #{fwd.1} parent=1 // pred_fallthru
      _
    // Predicated region
    $region26: #{fwd.1} parent=1 // pred_check
      _
    $region27: #{fwd.1} parent=1 // pred_check_branch
      %61 = sbr.rel (0) target = $region29
    $region28: #{fwd.1} parent=1 // pred_region
      _
    $region29: #{fwd.1} parent=1 // pred_fallthru
      _
    // Predicated region
    $region30: #{fwd.1} parent=1 // pred_check
      _
    $region31: #{fwd.1} parent=1 // pred_check_branch
      %63 = sbr.rel (0) target = $region33
    $region32: #{fwd.1} parent=1 // pred_region
      %65 = dma.done [#allocation3], 1024
    $region33: #{fwd.1} parent=1 // pred_fallthru
      _
    // Predicated region
    $region34: #{fwd.1} parent=1 // pred_check
      _
    $region35: #{fwd.1} parent=1 // pred_check_branch
      %67 = sbr.rel (0) target = $region37
    $region36: #{fwd.1} parent=1 // pred_region
      %69 = dma.done [#allocation6], 1024
    $region37: #{fwd.1} parent=1 // pred_fallthru
      _
    // Predicated region
    $region38: #{fwd.1} parent=1 // pred_check
      _
    $region39: #{fwd.1} parent=1 // pred_check_branch
      %71 = sbr.rel (0) target = $region41
    $region40: #{fwd.1} parent=1 // pred_region
      %73 = dma.done [#allocation6], 1024
    $region41: #{fwd.1} parent=1 // pred_fallthru
      _
    %v74 = vld [vmem:[%s0] sm:$0xf]
    %v75 = vld [vmem:[#allocation2] sm:$0xf]
    %v76 = vld [vmem:[#allocation2 + $0x4] sm:$0xf]
    %v77 = vld [vmem:[#allocation2 + $0x8] sm:$0xf]
    %v78 = vld [vmem:[#allocation2 + $0xc] sm:$0xf]
    %v79 = vld [vmem:[#allocation2 + $0x10] sm:$0xf]
    %v80 = vld [vmem:[#allocation2 + $0x14] sm:$0xf]
    %v81 = vld [vmem:[#allocation2 + $0x18] sm:$0xf]
    %v82 = vld [vmem:[#allocation2 + $0x1c] sm:$0xf]
    %v83 = vld [vmem:[#allocation2 + $0x20] sm:$0xf]
    %v84 = vld [vmem:[#allocation2 + $0x24] sm:$0xf]
    %v85 = vld [vmem:[#allocation2 + $0x28] sm:$0xf]
    %v86 = vld [vmem:[#allocation2 + $0x2c] sm:$0xf]
    %v87 = vld [vmem:[#allocation2 + $0x30] sm:$0xf]
    %v88 = vld [vmem:[#allocation2 + $0x34] sm:$0xf]
    %v89 = vld [vmem:[#allocation2 + $0x38] sm:$0xf]
    %v90 = vld [vmem:[#allocation2 + $0x3c] sm:$0xf]
    %v91 = vld [vmem:[%s2] sm:$0x1]
    %v93 = vperm.slane %v91, 0
    %v111 = vunpack.c.l.b16 %v75
    %v112 = vunpack.c.l.b16 %v76
    %v113 = vunpack.c.l.b16 %v77
    %v114 = vunpack.c.l.b16 %v78
    %v115 = vunpack.c.l.b16 %v79
    %v116 = vunpack.c.l.b16 %v80
    %v117 = vunpack.c.l.b16 %v81
    %v118 = vunpack.c.l.b16 %v82
    %v119 = vunpack.c.l.b16 %v83
    %v120 = vunpack.c.l.b16 %v84
    %v121 = vunpack.c.l.b16 %v85
    %v122 = vunpack.c.l.b16 %v86
    %v123 = vunpack.c.l.b16 %v87
    %v124 = vunpack.c.l.b16 %v88
    %v125 = vunpack.c.l.b16 %v89
    %v126 = vunpack.c.l.b16 %v90
    %v127 = vpack.c.b16 %v112, %v111
    %v128 = vpack.c.b16 %v114, %v113
    %v129 = vpack.c.b16 %v116, %v115
    %v130 = vpack.c.b16 %v118, %v117
    %v131 = vpack.c.b16 %v120, %v119
    %v132 = vpack.c.b16 %v122, %v121
    %v133 = vpack.c.b16 %v124, %v123
    %v134 = vpack.c.b16 %v126, %v125
    %143 = vmatpush.bf16.msra.mxu0 %v134
    %144 = vmatpush.bf16.msra.mxu0 %v133
    %145 = vmatpush.bf16.msra.mxu0 %v132
    %146 = vmatpush.bf16.msra.mxu0 %v131
    %147 = vmatpush.bf16.msra.mxu0 %v130
    %148 = vmatpush.bf16.msra.mxu0 %v129
    %149 = vmatpush.bf16.msra.mxu0 %v128
    %150 = vmatpush.bf16.msra.mxu0 %v127
    %151 = vmatmul.bf16.gmra.mxu0 %v74
    %v152 = vpop.f32.mrf.mxu0
    %v153 = vadd.f32 %v93, %v152
    %v154 = vpop.f32.mrf.mxu0
    %155 = vdwg.mxu0
    %v156 = vmul.f32 %v153, 0.01
    %v157 = vmax.f32 %v153, %v156
    %v158 = vpack.c.bf16 %v157, %v157
    %v159 = vld [vmem:[#allocation5] sm:$0xf]
    %v160 = vld [vmem:[#allocation5 + $0x4] sm:$0xf]
    %v161 = vld [vmem:[#allocation5 + $0x8] sm:$0xf]
    %v162 = vld [vmem:[#allocation5 + $0xc] sm:$0xf]
    %v163 = vld [vmem:[#allocation5 + $0x10] sm:$0xf]
    %v164 = vld [vmem:[#allocation5 + $0x14] sm:$0xf]
    %v165 = vld [vmem:[#allocation5 + $0x18] sm:$0xf]
    %v166 = vld [vmem:[#allocation5 + $0x1c] sm:$0xf]
    %v167 = vld [vmem:[#allocation5 + $0x20] sm:$0xf]
    %v168 = vld [vmem:[#allocation5 + $0x24] sm:$0xf]
    %v169 = vld [vmem:[#allocation5 + $0x28] sm:$0xf]
    %v170 = vld [vmem:[#allocation5 + $0x2c] sm:$0xf]
    %v171 = vld [vmem:[#allocation5 + $0x30] sm:$0xf]
    %v172 = vld [vmem:[#allocation5 + $0x34] sm:$0xf]
    %v173 = vld [vmem:[#allocation5 + $0x38] sm:$0xf]
    %v174 = vld [vmem:[#allocation5 + $0x3c] sm:$0xf]
    %v175 = vld [vmem:[%s4] sm:$0x1]
    %v177 = vperm.slane %v175, 0
    %v195 = vunpack.c.l.b16 %v159
    %v196 = vunpack.c.l.b16 %v160
    %v197 = vunpack.c.l.b16 %v161
    %v198 = vunpack.c.l.b16 %v162
    %v199 = vunpack.c.l.b16 %v163
    %v200 = vunpack.c.l.b16 %v164
    %v201 = vunpack.c.l.b16 %v165
    %v202 = vunpack.c.l.b16 %v166
    %v203 = vunpack.c.l.b16 %v167
    %v204 = vunpack.c.l.b16 %v168
    %v205 = vunpack.c.l.b16 %v169
    %v206 = vunpack.c.l.b16 %v170
    %v207 = vunpack.c.l.b16 %v171
    %v208 = vunpack.c.l.b16 %v172
    %v209 = vunpack.c.l.b16 %v173
    %v210 = vunpack.c.l.b16 %v174
    %v211 = vpack.c.b16 %v196, %v195
    %v212 = vpack.c.b16 %v198, %v197
    %v213 = vpack.c.b16 %v200, %v199
    %v214 = vpack.c.b16 %v202, %v201
    %v215 = vpack.c.b16 %v204, %v203
    %v216 = vpack.c.b16 %v206, %v205
    %v217 = vpack.c.b16 %v208, %v207
    %v218 = vpack.c.b16 %v210, %v209
    %227 = vmatpush.bf16.msra.mxu0 %v218
    %228 = vmatpush.bf16.msra.mxu0 %v217
    %229 = vmatpush.bf16.msra.mxu0 %v216
    %230 = vmatpush.bf16.msra.mxu0 %v215
    %231 = vmatpush.bf16.msra.mxu0 %v214
    %232 = vmatpush.bf16.msra.mxu0 %v213
    %233 = vmatpush.bf16.msra.mxu0 %v212
    %234 = vmatpush.bf16.msra.mxu0 %v211
    %235 = vmatmul.bf16.gmra.mxu0 %v158
    %v236 = vpop.f32.mrf.mxu0
    %v237 = vadd.f32 %v177, %v236
    %v238 = vpop.f32.mrf.mxu0
    %239 = vdwg.mxu0
    %v240 = vmul.f32 %v237, 0.01
    %v241 = vmax.f32 %v237, %v240
    %v242 = vpack.c.bf16 %v241, %v241
    %v243 = vld [vmem:[#allocation7] sm:$0xf]
    %v244 = vld [vmem:[#allocation7 + $0x4] sm:$0xf]
    %v245 = vld [vmem:[#allocation7 + $0x8] sm:$0xf]
    %v246 = vld [vmem:[#allocation7 + $0xc] sm:$0xf]
    %v247 = vld [vmem:[#allocation7 + $0x10] sm:$0xf]
    %v248 = vld [vmem:[#allocation7 + $0x14] sm:$0xf]
    %v249 = vld [vmem:[#allocation7 + $0x18] sm:$0xf]
    %v250 = vld [vmem:[#allocation7 + $0x1c] sm:$0xf]
    %v251 = vld [vmem:[#allocation7 + $0x20] sm:$0xf]
    %v252 = vld [vmem:[#allocation7 + $0x24] sm:$0xf]
    %v253 = vld [vmem:[#allocation7 + $0x28] sm:$0xf]
    %v254 = vld [vmem:[#allocation7 + $0x2c] sm:$0xf]
    %v255 = vld [vmem:[#allocation7 + $0x30] sm:$0xf]
    %v256 = vld [vmem:[#allocation7 + $0x34] sm:$0xf]
    %v257 = vld [vmem:[#allocation7 + $0x38] sm:$0xf]
    %v258 = vld [vmem:[#allocation7 + $0x3c] sm:$0xf]
    %v259 = vld [vmem:[%s6] sm:$0x1]
    %v261 = vperm.slane %v259, 0
    %v279 = vunpack.c.l.b16 %v243
    %v280 = vunpack.c.l.b16 %v244
    %v281 = vunpack.c.l.b16 %v245
    %v282 = vunpack.c.l.b16 %v246
    %v283 = vunpack.c.l.b16 %v247
    %v284 = vunpack.c.l.b16 %v248
    %v285 = vunpack.c.l.b16 %v249
    %v286 = vunpack.c.l.b16 %v250
    %v287 = vunpack.c.l.b16 %v251
    %v288 = vunpack.c.l.b16 %v252
    %v289 = vunpack.c.l.b16 %v253
    %v290 = vunpack.c.l.b16 %v254
    %v291 = vunpack.c.l.b16 %v255
    %v292 = vunpack.c.l.b16 %v256
    %v293 = vunpack.c.l.b16 %v257
    %v294 = vunpack.c.l.b16 %v258
    %v295 = vpack.c.b16 %v280, %v279
    %v296 = vpack.c.b16 %v282, %v281
    %v297 = vpack.c.b16 %v284, %v283
    %v298 = vpack.c.b16 %v286, %v285
    %v299 = vpack.c.b16 %v288, %v287
    %v300 = vpack.c.b16 %v290, %v289
    %v301 = vpack.c.b16 %v292, %v291
    %v302 = vpack.c.b16 %v294, %v293
    %311 = vmatpush.bf16.msra.mxu0 %v302
    %312 = vmatpush.bf16.msra.mxu0 %v301
    %313 = vmatpush.bf16.msra.mxu0 %v300
    %314 = vmatpush.bf16.msra.mxu0 %v299
    %315 = vmatpush.bf16.msra.mxu0 %v298
    %316 = vmatpush.bf16.msra.mxu0 %v297
    %317 = vmatpush.bf16.msra.mxu0 %v296
    %318 = vmatpush.bf16.msra.mxu0 %v295
    %319 = vmatmul.bf16.gmra.mxu0 %v242
    %v320 = vpop.f32.mrf.mxu0
    %v321 = vadd.f32 %v261, %v320
    %v322 = vpop.f32.mrf.mxu0
    %323 = vdwg.mxu0
    %324 = vst [vmem:[#allocation8] sm:$0xff] %v321
    // Predicated region
    $region42: #{fwd.1} parent=1 // pred_check
      _
    $region43: #{fwd.1} parent=1 // pred_check_branch
      %326 = sbr.rel (0) target = $region45
    $region44: #{fwd.1} parent=1 // pred_region
      %328 = vsyncadd [#allocation4], 0
      %s330 = sshll.u32 [#allocation8], 4
      %s331 = int_to_ptr.vmem [resolvable:$true] %s330
      %s332 = sshll.u32 %s7, 4
      %s333 = int_to_ptr.hbm [resolvable:$true] %s332
      %335 = dma.vmem_to_hbm [thread:$0]  %s331, 128, %s333, [#allocation4]
    $region45: #{fwd.1} parent=1 // pred_fallthru
      _
    // Predicated region
    $region46: #{fwd.1} parent=1 // pred_check
      _
    $region47: #{fwd.1} parent=1 // pred_check_branch
      %337 = sbr.rel (0) target = $region49
    $region48: #{fwd.1} parent=1 // pred_region
      %339 = dma.done [#allocation4], 128
    $region49: #{fwd.1} parent=1 // pred_fallthru
      _
    %340 = vsyncpa [#allocation3], 1
    %341 = vsyncpa [#allocation6], 1
    %342 = vsyncpa [#allocation4], 1

// kernel: fwd.1
$region0: #{fwd.1}
  #allocation0 [shape = 'u32[]', space=smem, size = 0x4, offset = 0x4, fixed_abs, tag = 'smem constant byte address 0x4 - core index']
  #allocation1 [shape = 'u32[72,128]{1,0:T(1,128)}', space=vmem, size = 0x9000, scoped, tag = 'internal scratch']
  %s0 = inlined_call_operand.vmem [shape: bf16[8,128], index: 0, kind: input, shape index: {}]
  %s1 = inlined_call_operand.hbm [shape: bf16[128,128], index: 1, kind: input, shape index: {}]
  %s2 = inlined_call_operand.vmem [shape: f32[1,128], index: 2, kind: input, shape index: {}]
  %s3 = inlined_call_operand.hbm [shape: bf16[128,128], index: 3, kind: input, shape index: {}]
  %s4 = inlined_call_operand.vmem [shape: f32[1,128], index: 4, kind: input, shape index: {}]
  %s5 = inlined_call_operand.hbm [shape: bf16[128,128], index: 5, kind: input, shape index: {}]
  %s6 = inlined_call_operand.vmem [shape: f32[1,128], index: 6, kind: input, shape index: {}]
  %s7 = inlined_call_operand.hbm [shape: f32[8,128], index: 7, kind: output, shape index: {}]
  %s8 = sld [smem:[#allocation0]]
  $region50: #{fwd.1} parent=0
    _
  %s10 = ssub.s32 1, %s8
  %s11 = scalar_select 0, %s10, %s8
  $region1: #{fwd.1} parent=0
    #allocation2 [shape = 'u8[32768]{0}', space=vmem, size = 0x8000, scoped, tag = 'input window, operand 1, single buffered']
    #allocation3 [shape = 's32[1]{0}', space=sflag, size = 0x4, scoped, tag = 'scoped memory for fwd.1']
    #allocation4 [shape = 's32[1]{0}', space=sflag, size = 0x4, scoped, tag = 'scoped memory for fwd.1']
    #allocation5 [shape = 'u8[32768]{0}', space=vmem, size = 0x8000, scoped, tag = 'input window, operand 3, single buffered']
    #allocation6 [shape = 's32[1]{0}', space=sflag, size = 0x4, scoped, tag = 'scoped memory for fwd.1']
    #allocation7 [shape = 'u8[32768]{0}', space=vmem, size = 0x8000, scoped, tag = 'input window, operand 5, single buffered']
    #allocation8 [shape = 'u8[4096]{0}', space=vmem, size = 0x1000, scoped, tag = 'output window, operand 0, single buffered']
    %12 = vsyncpa [#allocation3], 0
    %13 = vsyncpa [#allocation6], 0
    %14 = vsyncpa [#allocation4], 0
    // Predicated region
    $region2: #{fwd.1} parent=1 // pred_check
      _
    $region3: #{fwd.1} parent=1 // pred_check_branch
      %16 = sbr.rel (0) target = $region5
    $region4: #{fwd.1} parent=1 // pred_region
      _
    $region5: #{fwd.1} parent=1 // pred_fallthru
      _
    // Predicated region
    $region6: #{fwd.1} parent=1 // pred_check
      _
    $region7: #{fwd.1} parent=1 // pred_check_branch
      %18 = sbr.rel (0) target = $region9
    $region8: #{fwd.1} parent=1 // pred_region
      %20 = vsyncadd [#allocation3], 0
      %s21 = sshll.u32 %s1, 4
      %s22 = int_to_ptr.hbm [resolvable:$true] %s21
      %s23 = sshll.u32 [#allocation2], 4
      %s24 = int_to_ptr.vmem [resolvable:$true] %s23
      %29 = dma.hbm_to_vmem [thread:$0]  %s22, 1024, %s24, [#allocation3], 64, 64, 4
    $region9: #{fwd.1} parent=1 // pred_fallthru
      _
    // Predicated region
    $region10: #{fwd.1} parent=1 // pred_check
      _
    $region11: #{fwd.1} parent=1 // pred_check_branch
      %31 = sbr.rel (0) target = $region13
    $region12: #{fwd.1} parent=1 // pred_region
      _
    $region13: #{fwd.1} parent=1 // pred_fallthru
      _
    // Predicated region
    $region14: #{fwd.1} parent=1 // pred_check
      _
    $region15: #{fwd.1} parent=1 // pred_check_branch
      %33 = sbr.rel (0) target = $region17
    $region16: #{fwd.1} parent=1 // pred_region
      %35 = vsyncadd [#allocation6], 0
      %s36 = sshll.u32 %s3, 4
      %s37 = int_to_ptr.hbm [resolvable:$true] %s36
      %s38 = sshll.u32 [#allocation5], 4
      %s39 = int_to_ptr.vmem [resolvable:$true] %s38
      %44 = dma.hbm_to_vmem [thread:$0]  %s37, 1024, %s39, [#allocation6], 64, 64, 4
    $region17: #{fwd.1} parent=1 // pred_fallthru
      _
    // Predicated region
    $region18: #{fwd.1} parent=1 // pred_check
      _
    $region19: #{fwd.1} parent=1 // pred_check_branch
      %46 = sbr.rel (0) target = $region21
    $region20: #{fwd.1} parent=1 // pred_region
      _
    $region21: #{fwd.1} parent=1 // pred_fallthru
      _
    // Predicated region
    $region22: #{fwd.1} parent=1 // pred_check
      _
    $region23: #{fwd.1} parent=1 // pred_check_branch
      %48 = sbr.rel (0) target = $region25
    $region24: #{fwd.1} parent=1 // pred_region
      %50 = vsyncadd [#allocation6], 0
      %s51 = sshll.u32 %s5, 4
      %s52 = int_to_ptr.hbm [resolvable:$true] %s51
      %s53 = sshll.u32 [#allocation7], 4
      %s54 = int_to_ptr.vmem [resolvable:$true] %s53
      %59 = dma.hbm_to_vmem [thread:$0]  %s52, 1024, %s54, [#allocation6], 64, 64, 4
    $region25: #{fwd.1} parent=1 // pred_fallthru
      _
    // Predicated region
    $region26: #{fwd.1} parent=1 // pred_check
      _
    $region27: #{fwd.1} parent=1 // pred_check_branch
      %61 = sbr.rel (0) target = $region29
    $region28: #{fwd.1} parent=1 // pred_region
      _
    $region29: #{fwd.1} parent=1 // pred_fallthru
      _
    // Predicated region
    $region30: #{fwd.1} parent=1 // pred_check
      _
    $region31: #{fwd.1} parent=1 // pred_check_branch
      %63 = sbr.rel (0) target = $region33
    $region32: #{fwd.1} parent=1 // pred_region
      %65 = dma.done [#allocation3], 1024
    $region33: #{fwd.1} parent=1 // pred_fallthru
      _
    // Predicated region
    $region34: #{fwd.1} parent=1 // pred_check
      _
    $region35: #{fwd.1} parent=1 // pred_check_branch
      %67 = sbr.rel (0) target = $region37
    $region36: #{fwd.1} parent=1 // pred_region
      %69 = dma.done [#allocation6], 1024
    $region37: #{fwd.1} parent=1 // pred_fallthru
      _
    // Predicated region
    $region38: #{fwd.1} parent=1 // pred_check
      _
    $region39: #{fwd.1} parent=1 // pred_check_branch
      %71 = sbr.rel (0) target = $region41
    $region40: #{fwd.1} parent=1 // pred_region
      %73 = dma.done [#allocation6], 1024
    $region41: #{fwd.1} parent=1 // pred_fallthru
      _
    %v74 = vld [vmem:[%s0] sm:$0xf]
    %v75 = vld [vmem:[#allocation2] sm:$0xf]
    %v76 = vld [vmem:[#allocation2 + $0x4] sm:$0xf]
    %v77 = vld [vmem:[#allocation2 + $0x8] sm:$0xf]
    %v78 = vld [vmem:[#allocation2 + $0xc] sm:$0xf]
    %v79 = vld [vmem:[#allocation2 + $0x10] sm:$0xf]
    %v80 = vld [vmem:[#allocation2 + $0x14] sm:$0xf]
    %v81 = vld [vmem:[#allocation2 + $0x18] sm:$0xf]
    %v82 = vld [vmem:[#allocation2 + $0x1c] sm:$0xf]
    %v83 = vld [vmem:[#allocation2 + $0x20] sm:$0xf]
    %v84 = vld [vmem:[#allocation2 + $0x24] sm:$0xf]
    %v85 = vld [vmem:[#allocation2 + $0x28] sm:$0xf]
    %v86 = vld [vmem:[#allocation2 + $0x2c] sm:$0xf]
    %v87 = vld [vmem:[#allocation2 + $0x30] sm:$0xf]
    %v88 = vld [vmem:[#allocation2 + $0x34] sm:$0xf]
    %v89 = vld [vmem:[#allocation2 + $0x38] sm:$0xf]
    %v90 = vld [vmem:[#allocation2 + $0x3c] sm:$0xf]
    %v91 = vld [vmem:[%s2] sm:$0x1]
    %v93 = vperm.slane %v91, 0
    %v111 = vunpack.c.l.b16 %v75
    %v112 = vunpack.c.l.b16 %v76
    %v113 = vunpack.c.l.b16 %v77
    %v114 = vunpack.c.l.b16 %v78
    %v115 = vunpack.c.l.b16 %v79
    %v116 = vunpack.c.l.b16 %v80
    %v117 = vunpack.c.l.b16 %v81
    %v118 = vunpack.c.l.b16 %v82
    %v119 = vunpack.c.l.b16 %v83
    %v120 = vunpack.c.l.b16 %v84
    %v121 = vunpack.c.l.b16 %v85
    %v122 = vunpack.c.l.b16 %v86
    %v123 = vunpack.c.l.b16 %v87
    %v124 = vunpack.c.l.b16 %v88
    %v125 = vunpack.c.l.b16 %v89
    %v126 = vunpack.c.l.b16 %v90
    %v127 = vpack.c.b16 %v112, %v111
    %v128 = vpack.c.b16 %v114, %v113
    %v129 = vpack.c.b16 %v116, %v115
    %v130 = vpack.c.b16 %v118, %v117
    %v131 = vpack.c.b16 %v120, %v119
    %v132 = vpack.c.b16 %v122, %v121
    %v133 = vpack.c.b16 %v124, %v123
    %v134 = vpack.c.b16 %v126, %v125
    %143 = vmatpush.bf16.msra.mxu0 %v134
    %144 = vmatpush.bf16.msra.mxu0 %v133
    %145 = vmatpush.bf16.msra.mxu0 %v132
    %146 = vmatpush.bf16.msra.mxu0 %v131
    %147 = vmatpush.bf16.msra.mxu0 %v130
    %148 = vmatpush.bf16.msra.mxu0 %v129
    %149 = vmatpush.bf16.msra.mxu0 %v128
    %150 = vmatpush.bf16.msra.mxu0 %v127
    %151 = vmatmul.bf16.gmra.mxu0 %v74
    %v152 = vpop.f32.mrf.mxu0
    %v153 = vadd.f32 %v93, %v152
    %v154 = vpop.f32.mrf.mxu0
    %155 = vdwg.mxu0
    %v156 = vmul.f32 %v153, 0.01
    %v157 = vmax.f32 %v153, %v156
    %v158 = vpack.c.bf16 %v157, %v157
    %v159 = vld [vmem:[#allocation5] sm:$0xf]
    %v160 = vld [vmem:[#allocation5 + $0x4] sm:$0xf]
    %v161 = vld [vmem:[#allocation5 + $0x8] sm:$0xf]
    %v162 = vld [vmem:[#allocation5 + $0xc] sm:$0xf]
    %v163 = vld [vmem:[#allocation5 + $0x10] sm:$0xf]
    %v164 = vld [vmem:[#allocation5 + $0x14] sm:$0xf]
    %v165 = vld [vmem:[#allocation5 + $0x18] sm:$0xf]
    %v166 = vld [vmem:[#allocation5 + $0x1c] sm:$0xf]
    %v167 = vld [vmem:[#allocation5 + $0x20] sm:$0xf]
    %v168 = vld [vmem:[#allocation5 + $0x24] sm:$0xf]
    %v169 = vld [vmem:[#allocation5 + $0x28] sm:$0xf]
    %v170 = vld [vmem:[#allocation5 + $0x2c] sm:$0xf]
    %v171 = vld [vmem:[#allocation5 + $0x30] sm:$0xf]
    %v172 = vld [vmem:[#allocation5 + $0x34] sm:$0xf]
    %v173 = vld [vmem:[#allocation5 + $0x38] sm:$0xf]
    %v174 = vld [vmem:[#allocation5 + $0x3c] sm:$0xf]
    %v175 = vld [vmem:[%s4] sm:$0x1]
    %v177 = vperm.slane %v175, 0
    %v195 = vunpack.c.l.b16 %v159
    %v196 = vunpack.c.l.b16 %v160
    %v197 = vunpack.c.l.b16 %v161
    %v198 = vunpack.c.l.b16 %v162
    %v199 = vunpack.c.l.b16 %v163
    %v200 = vunpack.c.l.b16 %v164
    %v201 = vunpack.c.l.b16 %v165
    %v202 = vunpack.c.l.b16 %v166
    %v203 = vunpack.c.l.b16 %v167
    %v204 = vunpack.c.l.b16 %v168
    %v205 = vunpack.c.l.b16 %v169
    %v206 = vunpack.c.l.b16 %v170
    %v207 = vunpack.c.l.b16 %v171
    %v208 = vunpack.c.l.b16 %v172
    %v209 = vunpack.c.l.b16 %v173
    %v210 = vunpack.c.l.b16 %v174
    %v211 = vpack.c.b16 %v196, %v195
    %v212 = vpack.c.b16 %v198, %v197
    %v213 = vpack.c.b16 %v200, %v199
    %v214 = vpack.c.b16 %v202, %v201
    %v215 = vpack.c.b16 %v204, %v203
    %v216 = vpack.c.b16 %v206, %v205
    %v217 = vpack.c.b16 %v208, %v207
    %v218 = vpack.c.b16 %v210, %v209
    %227 = vmatpush.bf16.msra.mxu0 %v218
    %228 = vmatpush.bf16.msra.mxu0 %v217
    %229 = vmatpush.bf16.msra.mxu0 %v216
    %230 = vmatpush.bf16.msra.mxu0 %v215
    %231 = vmatpush.bf16.msra.mxu0 %v214
    %232 = vmatpush.bf16.msra.mxu0 %v213
    %233 = vmatpush.bf16.msra.mxu0 %v212
    %234 = vmatpush.bf16.msra.mxu0 %v211
    %235 = vmatmul.bf16.gmra.mxu0 %v158
    %v236 = vpop.f32.mrf.mxu0
    %v237 = vadd.f32 %v177, %v236
    %v238 = vpop.f32.mrf.mxu0
    %239 = vdwg.mxu0
    %v240 = vmul.f32 %v237, 0.01
    %v241 = vmax.f32 %v237, %v240
    %v242 = vpack.c.bf16 %v241, %v241
    %v243 = vld [vmem:[#allocation7] sm:$0xf]
    %v244 = vld [vmem:[#allocation7 + $0x4] sm:$0xf]
    %v245 = vld [vmem:[#allocation7 + $0x8] sm:$0xf]
    %v246 = vld [vmem:[#allocation7 + $0xc] sm:$0xf]
    %v247 = vld [vmem:[#allocation7 + $0x10] sm:$0xf]
    %v248 = vld [vmem:[#allocation7 + $0x14] sm:$0xf]
    %v249 = vld [vmem:[#allocation7 + $0x18] sm:$0xf]
    %v250 = vld [vmem:[#allocation7 + $0x1c] sm:$0xf]
    %v251 = vld [vmem:[#allocation7 + $0x20] sm:$0xf]
    %v252 = vld [vmem:[#allocation7 + $0x24] sm:$0xf]
    %v253 = vld [vmem:[#allocation7 + $0x28] sm:$0xf]
    %v254 = vld [vmem:[#allocation7 + $0x2c] sm:$0xf]
    %v255 = vld [vmem:[#allocation7 + $0x30] sm:$0xf]
    %v256 = vld [vmem:[#allocation7 + $0x34] sm:$0xf]
    %v257 = vld [vmem:[#allocation7 + $0x38] sm:$0xf]
    %v258 = vld [vmem:[#allocation7 + $0x3c] sm:$0xf]
    %v259 = vld [vmem:[%s6] sm:$0x1]
    %v261 = vperm.slane %v259, 0
    %v279 = vunpack.c.l.b16 %v243
    %v280 = vunpack.c.l.b16 %v244
    %v281 = vunpack.c.l.b16 %v245
    %v282 = vunpack.c.l.b16 %v246
    %v283 = vunpack.c.l.b16 %v247
    %v284 = vunpack.c.l.b16 %v248
    %v285 = vunpack.c.l.b16 %v249
    %v286 = vunpack.c.l.b16 %v250
    %v287 = vunpack.c.l.b16 %v251
    %v288 = vunpack.c.l.b16 %v252
    %v289 = vunpack.c.l.b16 %v253
    %v290 = vunpack.c.l.b16 %v254
    %v291 = vunpack.c.l.b16 %v255
    %v292 = vunpack.c.l.b16 %v256
    %v293 = vunpack.c.l.b16 %v257
    %v294 = vunpack.c.l.b16 %v258
    %v295 = vpack.c.b16 %v280, %v279
    %v296 = vpack.c.b16 %v282, %v281
    %v297 = vpack.c.b16 %v284, %v283
    %v298 = vpack.c.b16 %v286, %v285
    %v299 = vpack.c.b16 %v288, %v287
    %v300 = vpack.c.b16 %v290, %v289
    %v301 = vpack.c.b16 %v292, %v291
    %v302 = vpack.c.b16 %v294, %v293
    %311 = vmatpush.bf16.msra.mxu0 %v302
    %312 = vmatpush.bf16.msra.mxu0 %v301
    %313 = vmatpush.bf16.msra.mxu0 %v300
    %314 = vmatpush.bf16.msra.mxu0 %v299
    %315 = vmatpush.bf16.msra.mxu0 %v298
    %316 = vmatpush.bf16.msra.mxu0 %v297
    %317 = vmatpush.bf16.msra.mxu0 %v296
    %318 = vmatpush.bf16.msra.mxu0 %v295
    %319 = vmatmul.bf16.gmra.mxu0 %v242
    %v320 = vpop.f32.mrf.mxu0
    %v321 = vadd.f32 %v261, %v320
    %v322 = vpop.f32.mrf.mxu0
    %323 = vdwg.mxu0
    %324 = vst [vmem:[#allocation8] sm:$0xff] %v321
    // Predicated region
    $region42: #{fwd.1} parent=1 // pred_check
      _
    $region43: #{fwd.1} parent=1 // pred_check_branch
      %326 = sbr.rel (0) target = $region45
    $region44: #{fwd.1} parent=1 // pred_region
      %328 = vsyncadd [#allocation4], 0
      %s330 = sshll.u32 [#allocation8], 4
      %s331 = int_to_ptr.vmem [resolvable:$true] %s330
      %s332 = sshll.u32 %s7, 4
      %s333 = int_to_ptr.hbm [resolvable:$true] %s332
      %335 = dma.vmem_to_hbm [thread:$0]  %s331, 128, %s333, [#allocation4]
    $region45: #{fwd.1} parent=1 // pred_fallthru
      _
    // Predicated region
    $region46: #{fwd.1} parent=1 // pred_check
      _
    $region47: #{fwd.1} parent=1 // pred_check_branch
      %337 = sbr.rel (0) target = $region49
    $region48: #{fwd.1} parent=1 // pred_region
      %339 = dma.done [#allocation4], 128
    $region49: #{fwd.1} parent=1 // pred_fallthru
      _
    %340 = vsyncpa [#allocation3], 1
    %341 = vsyncpa [#allocation6], 1
    %342 = vsyncpa [#allocation4], 1

</llo_original>
